<compile_context>
chip_gen: v6e
topology: v6e:2x2x1
jax: 0.10.0
libtpu: 0.0.40
codegen_flags: <defaults>
</compile_context>

<pallas_src>
import functools

import jax
import jax.numpy as jnp
from jax import lax
from jax.experimental import pallas as pl
from jax.experimental.pallas import tpu as pltpu

LEAKY_SLOPE = 0.01  # nn.LeakyReLU default negative_slope


def _round_up(x, m):
    return ((x + m - 1) // m) * m


def _leaky_relu(x):
    return jnp.where(x > 0, x, LEAKY_SLOPE * x)


def _encoder_kernel(n_layers, latent_dim, x_ref, *rest):
    """Fused MLP encoder kernel.

    rest = (w0, b0, w1, b1, ..., w_{L-1}, b_{L-1}, out_ref)

    Weights are (in_features, out_features): each layer is x @ W + b on the
    MXU with f32 accumulation, LeakyReLU after every layer except the last.
    The head writes one slab: lanes < latent_dim hold the mean, lanes >=
    latent_dim hold sqrt(exp(logvar) + 1e-6).  jnp.exp is evaluated on the
    mean lanes too before the select; a large mean can overflow to +inf there,
    which is safely discarded by the select (no NaN unless h is already NaN).
    """
    out_ref = rest[-1]
    refs = rest[:-1]

    h = x_ref[...]
    for l in range(n_layers):
        w_ref = refs[2 * l]
        b_ref = refs[2 * l + 1]
        h = (jnp.dot(h.astype(w_ref.dtype), w_ref[...],
                     preferred_element_type=jnp.float32)
             + b_ref[...].astype(jnp.float32))
        if l < n_layers - 1:
            h = _leaky_relu(h)

    # Lane-masked Normal head: single full-width store (lane-dense when the
    # last layer's columns are padded to a 128-lane multiple).
    lane = lax.broadcasted_iota(jnp.int32, h.shape, dimension=1)
    out_ref[...] = jnp.where(lane < latent_dim, h,
                             jnp.sqrt(jnp.exp(h) + 1e-6)).astype(out_ref.dtype)


def prepare_encoder_params(weights, biases, latent_dim, *,
                           use_bf16=True, pad_out_lanes=True):
    """One-time weight preprocessing (hoisted out of the per-call hot path).

    weights[i]: (in_features, out_features) f32; biases[i]: (out_features,).
    Returns a pytree of kernel-ready parameters:
      * weights cast to bf16 (default) or kept f32,
      * biases reshaped to (1, N) and kept f32 (added to the f32 accumulator),
      * last layer padded with zero columns to a 128-lane multiple when
        pad_out_lanes=True so the head store is a full-width vst (pass False
        for very large batches where the extra writeback bytes dominate).
    """
    out_dim = 2 * latent_dim
    n_layers = len(weights)
    param_dtype = jnp.bfloat16 if use_bf16 else jnp.float32

    prep_w, prep_b = [], []
    for i, (w, b) in enumerate(zip(weights, biases)):
        w = jnp.asarray(w, jnp.float32)
        b = jnp.asarray(b, jnp.float32).reshape(1, -1)
        if i == n_layers - 1 and pad_out_lanes and out_dim % 128 != 0:
            out_dim_p = _round_up(out_dim, 128)
            w = jnp.pad(w, ((0, 0), (0, out_dim_p - out_dim)))
            b = jnp.pad(b, ((0, 0), (0, out_dim_p - out_dim)))
        prep_w.append(w.astype(param_dtype))
        prep_b.append(b)
    return {"weights": tuple(prep_w), "biases": tuple(prep_b)}


@functools.partial(jax.jit, static_argnames=("latent_dim", "tile_b"))
def encoder_forward(obs, context, params, *, latent_dim, tile_b=512):
    """obs: (B, H, W), context: (B, C). Returns (mean, std), each (B, latent_dim)."""
    weights = params["weights"]
    biases = params["biases"]
    n_layers = len(weights)
    B = obs.shape[0]

    # Single concatenated activation input (one contiguous HBM pass; fused by XLA).
    x = jnp.concatenate(
        [obs.reshape(B, -1).astype(jnp.float32), context.astype(jnp.float32)],
        axis=-1)
    in_dim = x.shape[1]
    out_dim = 2 * latent_dim
    out_dim_p = weights[-1].shape[1]          # padded (lane-dense) or raw out_dim

    # ---- batch tiling -------------------------------------------------------
    B8 = _round_up(B, 8)                      # minimum sublane-padded batch
    tb = _round_up(max(8, min(int(tile_b), B8)), 8)
    # Guarantee >= 2 grid programs when the batch permits, so both v7x
    # TensorCores get work under dimension_semantics=("parallel",).
    if B8 >= 16 and -(-B8 // tb) < 2:
        tb = _round_up(-(-B8 // 2), 8)
    Bp = _round_up(B8, tb)
    if Bp != B:
        x = jnp.pad(x, ((0, Bp - B), (0, 0)))

    # ---- specs --------------------------------------------------------------
    operands = [x]
    in_specs = [pl.BlockSpec((tb, in_dim), lambda i: (i, 0))]
    for w, b in zip(weights, biases):
        operands += [w, b]
        # Constant index maps: weights/biases stay VMEM-resident across tiles.
        in_specs += [pl.BlockSpec(w.shape, lambda i: (0, 0)),
                     pl.BlockSpec(b.shape, lambda i: (0, 0))]

    # ---- VMEM budget (generous; matters under v7x's 64 MiB VMEM) ------------
    param_bytes = (sum(int(w.size) * w.dtype.itemsize for w in weights)
                   + sum(int(b.size) * 4 for b in biases))
    widths = [in_dim] + [int(w.shape[1]) for w in weights]
    stream_bytes = 2 * tb * (in_dim + out_dim_p) * 4       # double-buffered I/O
    act_bytes = 2 * tb * max(widths) * 4                   # intermediate activations
    vmem_limit = int(min(100 << 20,
                         max(16 << 20,
                             2 * param_bytes + stream_bytes + act_bytes + (8 << 20))))

    # ---- advisory cost estimate ---------------------------------------------
    flops = 2 * Bp * sum(widths[i] * widths[i + 1] for i in range(n_layers))
    bytes_accessed = param_bytes + Bp * in_dim * 4 + Bp * out_dim_p * 4
    cost = pl.CostEstimate(flops=flops,
                           transcendentals=2 * Bp * out_dim_p,  # exp + sqrt, all lanes
                           bytes_accessed=bytes_accessed)

    kernel = functools.partial(_encoder_kernel, n_layers, latent_dim)
    out = pl.pallas_call(
        kernel,
        out_shape=jax.ShapeDtypeStruct((Bp, out_dim_p), jnp.float32),
        grid=(Bp // tb,),
        in_specs=in_specs,
        out_specs=pl.BlockSpec((tb, out_dim_p), lambda i: (i, 0)),
        compiler_params=pltpu.CompilerParams(
            dimension_semantics=("parallel",),
            vmem_limit_bytes=vmem_limit),
        cost_estimate=cost,
    )(*operands)

    mean = out[:B, :latent_dim]
    std = out[:B, latent_dim:out_dim]
    return mean, std


def init_params(key, in_dim, layer_dims):
    """Deterministic init: Linear layers stored as (in, out) matrices."""
    weights, biases = [], []
    d_in = in_dim
    for d_out in layer_dims:
        key, kw, kb = jax.random.split(key, 3)
        scale = 1.0 / jnp.sqrt(jnp.float32(d_in))
        weights.append(jax.random.uniform(kw, (d_in, d_out), jnp.float32, -scale, scale))
        biases.append(jax.random.uniform(kb, (d_out,), jnp.float32, -scale, scale))
        d_in = d_out
    return weights, biases


def reference_forward(obs, context, weights, biases, latent_dim):
    B = obs.shape[0]
    h = jnp.concatenate([obs.reshape(B, -1), context], axis=-1)
    for i, (w, b) in enumerate(zip(weights, biases)):
        h = h @ w + b
        if i < len(weights) - 1:
            h = jnp.where(h > 0, h, LEAKY_SLOPE * h)
    mean = h[:, :latent_dim]
    logvar = h[:, latent_dim:]
    return mean, jnp.sqrt(jnp.exp(logvar) + 1e-6)


if __name__ == "__main__":
    # Small shapes consistent with the module:
    #   obs_dim = (4, 4) -> obs_dim_flat = 16, context_dim = 8,
    #   hidden_dims = [32, 32], latent_dim = 4 (MLP output = 2 * latent_dim = 8)
    B = 2
    obs_dim = (4, 4)
    context_dim = 8
    hidden_dims = [32, 32]
    latent_dim = 4

    key = jax.random.PRNGKey(0)
    k_obs, k_ctx, k_par = jax.random.split(key, 3)

    obs = jax.random.normal(k_obs, (B,) + obs_dim, jnp.float32)
    context = jax.random.normal(k_ctx, (B, context_dim), jnp.float32)

    in_dim = obs_dim[0] * obs_dim[1] + context_dim
    layer_dims = hidden_dims + [latent_dim * 2]
    weights, biases = init_params(k_par, in_dim, layer_dims)

    ref_mean, ref_std = reference_forward(obs, context, weights, biases, latent_dim)

    # Exact-precision path (f32 weights) for the correctness check.
    params_f32 = prepare_encoder_params(weights, biases, latent_dim,
                                        use_bf16=False, pad_out_lanes=True)
    mean, std = encoder_forward(obs, context, params_f32, latent_dim=latent_dim)
    jax.block_until_ready((mean, std))
    assert mean.shape == (B, latent_dim) and std.shape == (B, latent_dim)
    assert jnp.allclose(mean, ref_mean, atol=1e-5, rtol=1e-5)
    assert jnp.allclose(std, ref_std, atol=1e-5, rtol=1e-5)

    # Default deployment path (bf16 weights, f32 accumulation): smoke test with
    # a loose tolerance — bf16 intentionally diverges slightly from the f32 ref.
    params_bf16 = prepare_encoder_params(weights, biases, latent_dim)
    mean_bf, std_bf = encoder_forward(obs, context, params_bf16, latent_dim=latent_dim)
    jax.block_until_ready((mean_bf, std_bf))
    assert jnp.all(jnp.isfinite(mean_bf)) and jnp.all(jnp.isfinite(std_bf))
    assert jnp.allclose(mean_bf, ref_mean, atol=1e-1, rtol=1e-1)
    assert jnp.allclose(std_bf, ref_std, atol=1e-1, rtol=1e-1)

    # TODO(synk): torch.distributions.Normal object construction has no kernel
    # equivalent; the kernel returns (mean, std) tensors instead.
    print("KERNEL_OK")
</pallas_src>

<mosaic_0001>
module attributes {stable_mosaic.version = 11 : i64} {
  func.func @_encoder_kernel(%arg0: i32, %arg1: memref<8x24xf32, #tpu.memory_space<vmem>>, %arg2: memref<24x32xf32, #tpu.memory_space<vmem>>, %arg3: memref<1x32xf32, #tpu.memory_space<vmem>>, %arg4: memref<32x32xf32, #tpu.memory_space<vmem>>, %arg5: memref<1x32xf32, #tpu.memory_space<vmem>>, %arg6: memref<32x128xf32, #tpu.memory_space<vmem>>, %arg7: memref<1x128xf32, #tpu.memory_space<vmem>>, %arg8: memref<8x128xf32, #tpu.memory_space<vmem>>) attributes {dimension_semantics = [#tpu.dimension_semantics<parallel>], iteration_bounds = array<i64: 1>, scalar_prefetch = 0 : i64, scratch_operands = 0 : i64, tpu.core_type = #tpu.core_type<tc>, window_params = [{transform_indices = @transform_0, window_bounds = array<i64: 8, 24>}, {pipeline_mode = #tpu.pipeline_mode<synchronous>, transform_indices = @transform_1, window_bounds = array<i64: 24, 32>}, {pipeline_mode = #tpu.pipeline_mode<synchronous>, transform_indices = @transform_2, window_bounds = array<i64: 1, 32>}, {pipeline_mode = #tpu.pipeline_mode<synchronous>, transform_indices = @transform_3, window_bounds = array<i64: 32, 32>}, {pipeline_mode = #tpu.pipeline_mode<synchronous>, transform_indices = @transform_4, window_bounds = array<i64: 1, 32>}, {pipeline_mode = #tpu.pipeline_mode<synchronous>, transform_indices = @transform_5, window_bounds = array<i64: 32, 128>}, {pipeline_mode = #tpu.pipeline_mode<synchronous>, transform_indices = @transform_6, window_bounds = array<i64: 1, 128>}, {transform_indices = @transform_7, window_bounds = array<i64: 8, 128>}]} {
    %c0 = arith.constant 0 : index
    %c0_0 = arith.constant 0 : index
    %0 = vector.load %arg1[%c0, %c0_0] : memref<8x24xf32, #tpu.memory_space<vmem>>, vector<8x24xf32>
    %c0_1 = arith.constant 0 : index
    %c0_2 = arith.constant 0 : index
    %1 = vector.load %arg2[%c0_1, %c0_2] : memref<24x32xf32, #tpu.memory_space<vmem>>, vector<24x32xf32>
    %cst = arith.constant dense<0.000000e+00> : vector<8x32xf32>
    %2 = tpu.matmul %0, %1, %cst {dimension_numbers = #tpu.dot_dimension_numbers<[1], [0], [0], [1], [0, 0, 1, 1], [], []>} : vector<8x24xf32>, vector<24x32xf32>, vector<8x32xf32> -> vector<8x32xf32>
    %c0_3 = arith.constant 0 : index
    %c0_4 = arith.constant 0 : index
    %3 = vector.load %arg3[%c0_3, %c0_4] : memref<1x32xf32, #tpu.memory_space<vmem>>, vector<1x32xf32>
    %4 = vector.broadcast %3 : vector<1x32xf32> to vector<8x32xf32>
    %5 = arith.addf %2, %4 : vector<8x32xf32>
    %cst_5 = arith.constant 0.000000e+00 : f32
    %6 = vector.broadcast %cst_5 : f32 to vector<8x32xf32>
    %7 = arith.cmpf ogt, %5, %6 : vector<8x32xf32>
    %cst_6 = arith.constant 0.00999999977 : f32
    %8 = vector.broadcast %cst_6 : f32 to vector<8x32xf32>
    %9 = arith.mulf %8, %5 : vector<8x32xf32>
    %10 = arith.select %7, %5, %9 : vector<8x32xi1>, vector<8x32xf32>
    %c0_7 = arith.constant 0 : index
    %c0_8 = arith.constant 0 : index
    %11 = vector.load %arg4[%c0_7, %c0_8] : memref<32x32xf32, #tpu.memory_space<vmem>>, vector<32x32xf32>
    %cst_9 = arith.constant dense<0.000000e+00> : vector<8x32xf32>
    %12 = tpu.matmul %10, %11, %cst_9 {dimension_numbers = #tpu.dot_dimension_numbers<[1], [0], [0], [1], [0, 0, 1, 1], [], []>} : vector<8x32xf32>, vector<32x32xf32>, vector<8x32xf32> -> vector<8x32xf32>
    %c0_10 = arith.constant 0 : index
    %c0_11 = arith.constant 0 : index
    %13 = vector.load %arg5[%c0_10, %c0_11] : memref<1x32xf32, #tpu.memory_space<vmem>>, vector<1x32xf32>
    %14 = vector.broadcast %13 : vector<1x32xf32> to vector<8x32xf32>
    %15 = arith.addf %12, %14 : vector<8x32xf32>
    %cst_12 = arith.constant 0.000000e+00 : f32
    %16 = vector.broadcast %cst_12 : f32 to vector<8x32xf32>
    %17 = arith.cmpf ogt, %15, %16 : vector<8x32xf32>
    %cst_13 = arith.constant 0.00999999977 : f32
    %18 = vector.broadcast %cst_13 : f32 to vector<8x32xf32>
    %19 = arith.mulf %18, %15 : vector<8x32xf32>
    %20 = arith.select %17, %15, %19 : vector<8x32xi1>, vector<8x32xf32>
    %c0_14 = arith.constant 0 : index
    %c0_15 = arith.constant 0 : index
    %21 = vector.load %arg6[%c0_14, %c0_15] : memref<32x128xf32, #tpu.memory_space<vmem>>, vector<32x128xf32>
    %cst_16 = arith.constant dense<0.000000e+00> : vector<8x128xf32>
    %22 = tpu.matmul %20, %21, %cst_16 {dimension_numbers = #tpu.dot_dimension_numbers<[1], [0], [0], [1], [0, 0, 1, 1], [], []>} : vector<8x32xf32>, vector<32x128xf32>, vector<8x128xf32> -> vector<8x128xf32>
    %c0_17 = arith.constant 0 : index
    %c0_18 = arith.constant 0 : index
    %23 = vector.load %arg7[%c0_17, %c0_18] : memref<1x128xf32, #tpu.memory_space<vmem>>, vector<1x128xf32>
    %24 = vector.broadcast %23 : vector<1x128xf32> to vector<8x128xf32>
    %25 = arith.addf %22, %24 : vector<8x128xf32>
    %26 = tpu.iota {dimensions = array<i32: 1>} : vector<8x128xi32>
    %c4_i32 = arith.constant 4 : i32
    %27 = vector.broadcast %c4_i32 : i32 to vector<8x128xi32>
    %28 = arith.cmpi slt, %26, %27 : vector<8x128xi32>
    %29 = math.exp %25 : vector<8x128xf32>
    %cst_19 = arith.constant 9.99999997E-7 : f32
    %30 = vector.broadcast %cst_19 : f32 to vector<8x128xf32>
    %31 = arith.addf %29, %30 : vector<8x128xf32>
    %32 = math.sqrt %31 : vector<8x128xf32>
    %33 = arith.select %28, %25, %32 : vector<8x128xi1>, vector<8x128xf32>
    %c0_20 = arith.constant 0 : index
    %c0_21 = arith.constant 0 : index
    %34 = vector.load %arg8[%c0_20, %c0_21] : memref<8x128xf32, #tpu.memory_space<vmem>>, vector<8x128xf32>
    tpu.vector_store %arg8[%c0_20, %c0_21], %33 {strides = array<i32>} : memref<8x128xf32, #tpu.memory_space<vmem>>, vector<8x128xf32>,
    return
  }
  func.func @transform_0(%arg0: i32) -> (i32, i32) {
    %c0_i32 = arith.constant 0 : i32
    %c0_i32_0 = arith.constant 0 : i32
    return %arg0, %c0_i32 : i32, i32
  }
  func.func @transform_1(%arg0: i32) -> (i32, i32) {
    %c0_i32 = arith.constant 0 : i32
    %c0_i32_0 = arith.constant 0 : i32
    %c0_i32_1 = arith.constant 0 : i32
    return %c0_i32, %c0_i32_0 : i32, i32
  }
  func.func @transform_2(%arg0: i32) -> (i32, i32) {
    %c0_i32 = arith.constant 0 : i32
    %c0_i32_0 = arith.constant 0 : i32
    %c0_i32_1 = arith.constant 0 : i32
    return %c0_i32, %c0_i32_0 : i32, i32
  }
  func.func @transform_3(%arg0: i32) -> (i32, i32) {
    %c0_i32 = arith.constant 0 : i32
    %c0_i32_0 = arith.constant 0 : i32
    %c0_i32_1 = arith.constant 0 : i32
    return %c0_i32, %c0_i32_0 : i32, i32
  }
  func.func @transform_4(%arg0: i32) -> (i32, i32) {
    %c0_i32 = arith.constant 0 : i32
    %c0_i32_0 = arith.constant 0 : i32
    %c0_i32_1 = arith.constant 0 : i32
    return %c0_i32, %c0_i32_0 : i32, i32
  }
  func.func @transform_5(%arg0: i32) -> (i32, i32) {
    %c0_i32 = arith.constant 0 : i32
    %c0_i32_0 = arith.constant 0 : i32
    %c0_i32_1 = arith.constant 0 : i32
    return %c0_i32, %c0_i32_0 : i32, i32
  }
  func.func @transform_6(%arg0: i32) -> (i32, i32) {
    %c0_i32 = arith.constant 0 : i32
    %c0_i32_0 = arith.constant 0 : i32
    %c0_i32_1 = arith.constant 0 : i32
    return %c0_i32, %c0_i32_0 : i32, i32
  }
  func.func @transform_7(%arg0: i32) -> (i32, i32) {
    %c0_i32 = arith.constant 0 : i32
    %c0_i32_0 = arith.constant 0 : i32
    return %arg0, %c0_i32 : i32, i32
  }
}

</mosaic_0001>

<llo_original>
// kernel: encoder_forward.1
$region0: #{encoder_forward.1}
  #allocation0 [shape = 'u32[]', space=smem, size = 0x4, offset = 0x4, fixed_abs, tag = 'smem constant byte address 0x4 - core index']
  #allocation1 [shape = 'u32[144,128]{1,0:T(1,128)}', space=vmem, size = 0x12000, scoped, tag = 'internal scratch']
  %s0 = inlined_call_operand.vmem [shape: f32[8,24], index: 0, kind: input, shape index: {}]
  %s1 = inlined_call_operand.hbm [shape: f32[24,32], index: 1, kind: input, shape index: {}]
  %s2 = inlined_call_operand.hbm [shape: f32[1,32], index: 2, kind: input, shape index: {}]
  %s3 = inlined_call_operand.vmem [shape: f32[32,32], index: 3, kind: input, shape index: {}]
  %s4 = inlined_call_operand.hbm [shape: f32[1,32], index: 4, kind: input, shape index: {}]
  %s5 = inlined_call_operand.hbm [shape: f32[32,128], index: 5, kind: input, shape index: {}]
  %s6 = inlined_call_operand.hbm [shape: f32[1,128], index: 6, kind: input, shape index: {}]
  %s7 = inlined_call_operand.vmem [shape: f32[8,128], index: 7, kind: output, shape index: {}]
  %s8 = sld [smem:[#allocation0]]
  $region58: #{encoder_forward.1} parent=0
    _
  %s10 = ssub.s32 1, %s8
  %s11 = scalar_select 0, %s10, %s8
  $region1: #{encoder_forward.1} parent=0
    #allocation2 [shape = 'u8[12288]{0}', space=vmem, size = 0x3000, scoped, tag = 'input window, operand 1, single buffered']
    #allocation3 [shape = 's32[1]{0}', space=sflag, size = 0x4, scoped, tag = 'scoped memory for encoder_forward.1']
    #allocation4 [shape = 'u8[512]{0}', space=vmem, size = 0x400, scoped, tag = 'input window, operand 2, single buffered']
    #allocation5 [shape = 's32[1]{0}', space=sflag, size = 0x4, scoped, tag = 'scoped memory for encoder_forward.1']
    #allocation6 [shape = 'u8[512]{0}', space=vmem, size = 0x400, scoped, tag = 'input window, operand 4, single buffered']
    #allocation7 [shape = 'u8[16384]{0}', space=vmem, size = 0x4000, scoped, tag = 'input window, operand 5, single buffered']
    #allocation8 [shape = 's32[1]{0}', space=sflag, size = 0x4, scoped, tag = 'scoped memory for encoder_forward.1']
    #allocation9 [shape = 'u8[512]{0}', space=vmem, size = 0x400, scoped, tag = 'input window, operand 6, single buffered']
    %12 = vsyncpa [#allocation3], 0
    %13 = vsyncpa [#allocation5], 0
    %14 = vsyncpa [#allocation8], 0
    // Predicated region
    $region2: #{encoder_forward.1} parent=1 // pred_check
      _
    $region3: #{encoder_forward.1} parent=1 // pred_check_branch
      %16 = sbr.rel (0) target = $region5
    $region4: #{encoder_forward.1} parent=1 // pred_region
      _
    $region5: #{encoder_forward.1} parent=1 // pred_fallthru
      _
    // Predicated region
    $region6: #{encoder_forward.1} parent=1 // pred_check
      _
    $region7: #{encoder_forward.1} parent=1 // pred_check_branch
      %18 = sbr.rel (0) target = $region9
    $region8: #{encoder_forward.1} parent=1 // pred_region
      %s20 = ssub.s32 384, 384
      %21 = vsyncadd [#allocation3], %s20
      %s22 = sshll.u32 [#allocation2], 4
      %s23 = int_to_ptr.vmem [resolvable:$true] %s22
      %28 = dma.hbm_to_vmem [thread:$0]  %s1, 384, %s23, [#allocation3], 128, 128, 8
    $region9: #{encoder_forward.1} parent=1 // pred_fallthru
      _
    // Predicated region
    $region10: #{encoder_forward.1} parent=1 // pred_check
      _
    $region11: #{encoder_forward.1} parent=1 // pred_check_branch
      %30 = sbr.rel (0) target = $region13
    $region12: #{encoder_forward.1} parent=1 // pred_region
      %s32 = ssub.s32 16, 16
      %33 = vsyncadd [#allocation5], %s32
      %s35 = sshll.u32 [#allocation4], 4
      %s36 = int_to_ptr.vmem [resolvable:$true] %s35
      %38 = dma.hbm_to_vmem [thread:$0]  %s2, 16, %s36, [#allocation5]
    $region13: #{encoder_forward.1} parent=1 // pred_fallthru
      _
    // Predicated region
    $region14: #{encoder_forward.1} parent=1 // pred_check
      _
    $region15: #{encoder_forward.1} parent=1 // pred_check_branch
      %40 = sbr.rel (0) target = $region17
    $region16: #{encoder_forward.1} parent=1 // pred_region
      _
    $region17: #{encoder_forward.1} parent=1 // pred_fallthru
      _
    // Predicated region
    $region18: #{encoder_forward.1} parent=1 // pred_check
      _
    $region19: #{encoder_forward.1} parent=1 // pred_check_branch
      %42 = sbr.rel (0) target = $region21
    $region20: #{encoder_forward.1} parent=1 // pred_region
      %s44 = ssub.s32 16, 16
      %45 = vsyncadd [#allocation5], %s44
      %s47 = sshll.u32 [#allocation6], 4
      %s48 = int_to_ptr.vmem [resolvable:$true] %s47
      %50 = dma.hbm_to_vmem [thread:$0]  %s4, 16, %s48, [#allocation5]
    $region21: #{encoder_forward.1} parent=1 // pred_fallthru
      _
    // Predicated region
    $region22: #{encoder_forward.1} parent=1 // pred_check
      _
    $region23: #{encoder_forward.1} parent=1 // pred_check_branch
      %52 = sbr.rel (0) target = $region25
    $region24: #{encoder_forward.1} parent=1 // pred_region
      %s54 = ssub.s32 512, 512
      %55 = vsyncadd [#allocation8], %s54
      %s56 = sshll.u32 [#allocation7], 4
      %s57 = int_to_ptr.vmem [resolvable:$true] %s56
      %62 = dma.hbm_to_vmem [thread:$0]  %s5, 512, %s57, [#allocation8], 128, 128, 8
    $region25: #{encoder_forward.1} parent=1 // pred_fallthru
      _
    // Predicated region
    $region26: #{encoder_forward.1} parent=1 // pred_check
      _
    $region27: #{encoder_forward.1} parent=1 // pred_check_branch
      %64 = sbr.rel (0) target = $region29
    $region28: #{encoder_forward.1} parent=1 // pred_region
      %s66 = ssub.s32 16, 16
      %67 = vsyncadd [#allocation8], %s66
      %s69 = sshll.u32 [#allocation9], 4
      %s70 = int_to_ptr.vmem [resolvable:$true] %s69
      %72 = dma.hbm_to_vmem [thread:$0]  %s6, 16, %s70, [#allocation8]
    $region29: #{encoder_forward.1} parent=1 // pred_fallthru
      _
    // Predicated region
    $region30: #{encoder_forward.1} parent=1 // pred_check
      _
    $region31: #{encoder_forward.1} parent=1 // pred_check_branch
      %74 = sbr.rel (0) target = $region33
    $region32: #{encoder_forward.1} parent=1 // pred_region
      %75 = dma.done [#allocation3], 384
    $region33: #{encoder_forward.1} parent=1 // pred_fallthru
      _
    // Predicated region
    $region34: #{encoder_forward.1} parent=1 // pred_check
      _
    $region35: #{encoder_forward.1} parent=1 // pred_check_branch
      %77 = sbr.rel (0) target = $region37
    $region36: #{encoder_forward.1} parent=1 // pred_region
      %78 = dma.done [#allocation5], 16
    $region37: #{encoder_forward.1} parent=1 // pred_fallthru
      _
    // Predicated region
    $region38: #{encoder_forward.1} parent=1 // pred_check
      _
    $region39: #{encoder_forward.1} parent=1 // pred_check_branch
      %80 = sbr.rel (0) target = $region41
    $region40: #{encoder_forward.1} parent=1 // pred_region
      %81 = dma.done [#allocation5], 16
    $region41: #{encoder_forward.1} parent=1 // pred_fallthru
      _
    // Predicated region
    $region42: #{encoder_forward.1} parent=1 // pred_check
      _
    $region43: #{encoder_forward.1} parent=1 // pred_check_branch
      %83 = sbr.rel (0) target = $region45
    $region44: #{encoder_forward.1} parent=1 // pred_region
      %84 = dma.done [#allocation8], 512
    $region45: #{encoder_forward.1} parent=1 // pred_fallthru
      _
    // Predicated region
    $region46: #{encoder_forward.1} parent=1 // pred_check
      _
    $region47: #{encoder_forward.1} parent=1 // pred_check_branch
      %86 = sbr.rel (0) target = $region49
    $region48: #{encoder_forward.1} parent=1 // pred_region
      %87 = dma.done [#allocation8], 16
    $region49: #{encoder_forward.1} parent=1 // pred_fallthru
      _
    %v88 = vld [vmem:[%s0] sm:$0xff]
    %v89 = vld [vmem:[#allocation2] sm:$0xff]
    %v90 = vld [vmem:[#allocation2 + $0x8] sm:$0xff]
    %v91 = vld [vmem:[#allocation2 + $0x10] sm:$0xff]
    %v92 = vld [vmem:[#allocation4] sm:$0x1]
    %v94 = vlaneseq
    %v95 = vshrl.u32 %v94, 7
    %v96 = vsub.s32 0, %v95
    %v97 = vrot.slane %v92, %v96
    %vm99 = vcmask 195584
    %v101 = vsel %vm99, %v88, 0
    %103 = vmatprep.subr.mxu0 0.0
    %104 = vmatpush1.msra.mxu0 0.0
    %105 = vmatprep.subr.mxu0 0.0
    %106 = vmatpush1.msra.mxu0 0.0
    %107 = vmatprep.subr.mxu0 0.0
    %108 = vmatpush1.msra.mxu0 0.0
    %109 = vmatprep.subr.mxu0 0.0
    %110 = vmatpush1.msra.mxu0 0.0
    %111 = vmatprep.subr.mxu0 0.0
    %112 = vmatpush1.msra.mxu0 0.0
    %113 = vmatprep.subr.mxu0 0.0
    %114 = vmatpush1.msra.mxu0 0.0
    %115 = vmatprep.subr.mxu0 0.0
    %116 = vmatpush1.msra.mxu0 0.0
    %117 = vmatprep.subr.mxu0 0.0
    %118 = vmatpush1.msra.mxu0 0.0
    %119 = vmatprep.subr.mxu0 0.0
    %120 = vmatpush1.msra.mxu0 0.0
    %121 = vmatprep.subr.mxu0 0.0
    %122 = vmatpush1.msra.mxu0 0.0
    %123 = vmatprep.subr.mxu0 0.0
    %124 = vmatpush1.msra.mxu0 0.0
    %125 = vmatprep.subr.mxu0 0.0
    %126 = vmatpush1.msra.mxu0 0.0
    %127 = vmatprep.subr.mxu0 0.0
    %128 = vmatpush1.msra.mxu0 0.0
    %129 = vmatprep.subr.mxu0 0.0
    %130 = vmatpush1.msra.mxu0 %v91
    %131 = vmatprep.subr.mxu0 0.0
    %132 = vmatpush1.msra.mxu0 %v90
    %133 = vmatprep.subr.mxu0 0.0
    %134 = vmatpush1.msra.mxu0 %v89
    %135 = vmatprep.subr.mxu0 0.0
    %136 = vmatpush2.msra.mxu0 0.0
    %137 = vmatprep.subr.mxu0 0.0
    %138 = vmatpush2.msra.mxu0 0.0
    %139 = vmatprep.subr.mxu0 0.0
    %140 = vmatpush2.msra.mxu0 0.0
    %141 = vmatprep.subr.mxu0 0.0
    %142 = vmatpush2.msra.mxu0 0.0
    %143 = vmatprep.subr.mxu0 0.0
    %144 = vmatpush2.msra.mxu0 0.0
    %145 = vmatprep.subr.mxu0 0.0
    %146 = vmatpush2.msra.mxu0 0.0
    %147 = vmatprep.subr.mxu0 0.0
    %148 = vmatpush2.msra.mxu0 0.0
    %149 = vmatprep.subr.mxu0 0.0
    %150 = vmatpush2.msra.mxu0 0.0
    %151 = vmatprep.subr.mxu0 0.0
    %152 = vmatpush2.msra.mxu0 0.0
    %153 = vmatprep.subr.mxu0 0.0
    %154 = vmatpush2.msra.mxu0 0.0
    %155 = vmatprep.subr.mxu0 0.0
    %156 = vmatpush2.msra.mxu0 0.0
    %157 = vmatprep.subr.mxu0 0.0
    %158 = vmatpush2.msra.mxu0 0.0
    %159 = vmatprep.subr.mxu0 0.0
    %160 = vmatpush2.msra.mxu0 0.0
    %161 = vmatprep.subr.mxu0 0.0
    %162 = vmatpush2.msra.mxu0 0.0
    %163 = vmatprep.subr.mxu0 0.0
    %164 = vmatpush2.msra.mxu0 0.0
    %165 = vmatprep.subr.mxu0 0.0
    %166 = vmatpush2.msra.mxu0 0.0
    %167 = vmatprep.mubr.f32.mxu0 0.0
    %168 = vmatmul.mubr.f32.gmra.mxu0 %v101
    %v169 = vpop.f32.mrf.mxu0
    %v170 = vadd.f32 %v97, %v169
    %v171 = vpop.f32.mrf.mxu0
    %172 = vdwg.mxu0
    %vm173 = vcmp.gt.f32.partialorder %v170, 0.0
    %v174 = vmul.f32 %v170, 0.01
    %v175 = vsel %vm173, %v170, %v174
    %v176 = vld [vmem:[%s3] sm:$0xff]
    %v177 = vld [vmem:[%s3 + $0x8] sm:$0xff]
    %v178 = vld [vmem:[%s3 + $0x10] sm:$0xff]
    %v179 = vld [vmem:[%s3 + $0x18] sm:$0xff]
    %v180 = vld [vmem:[#allocation6] sm:$0x1]
    %v182 = vlaneseq
    %v183 = vshrl.u32 %v182, 7
    %v184 = vsub.s32 0, %v183
    %v185 = vrot.slane %v180, %v184
    %vm187 = vcmask 261120
    %v189 = vsel %vm187, %v175, 0
    %191 = vmatprep.subr.mxu0 0.0
    %192 = vmatpush1.msra.mxu0 0.0
    %193 = vmatprep.subr.mxu0 0.0
    %194 = vmatpush1.msra.mxu0 0.0
    %195 = vmatprep.subr.mxu0 0.0
    %196 = vmatpush1.msra.mxu0 0.0
    %197 = vmatprep.subr.mxu0 0.0
    %198 = vmatpush1.msra.mxu0 0.0
    %199 = vmatprep.subr.mxu0 0.0
    %200 = vmatpush1.msra.mxu0 0.0
    %201 = vmatprep.subr.mxu0 0.0
    %202 = vmatpush1.msra.mxu0 0.0
    %203 = vmatprep.subr.mxu0 0.0
    %204 = vmatpush1.msra.mxu0 0.0
    %205 = vmatprep.subr.mxu0 0.0
    %206 = vmatpush1.msra.mxu0 0.0
    %207 = vmatprep.subr.mxu0 0.0
    %208 = vmatpush1.msra.mxu0 0.0
    %209 = vmatprep.subr.mxu0 0.0
    %210 = vmatpush1.msra.mxu0 0.0
    %211 = vmatprep.subr.mxu0 0.0
    %212 = vmatpush1.msra.mxu0 0.0
    %213 = vmatprep.subr.mxu0 0.0
    %214 = vmatpush1.msra.mxu0 0.0
    %215 = vmatprep.subr.mxu0 0.0
    %216 = vmatpush1.msra.mxu0 %v179
    %217 = vmatprep.subr.mxu0 0.0
    %218 = vmatpush1.msra.mxu0 %v178
    %219 = vmatprep.subr.mxu0 0.0
    %220 = vmatpush1.msra.mxu0 %v177
    %221 = vmatprep.subr.mxu0 0.0
    %222 = vmatpush1.msra.mxu0 %v176
    %223 = vmatprep.subr.mxu0 0.0
    %224 = vmatpush2.msra.mxu0 0.0
    %225 = vmatprep.subr.mxu0 0.0
    %226 = vmatpush2.msra.mxu0 0.0
    %227 = vmatprep.subr.mxu0 0.0
    %228 = vmatpush2.msra.mxu0 0.0
    %229 = vmatprep.subr.mxu0 0.0
    %230 = vmatpush2.msra.mxu0 0.0
    %231 = vmatprep.subr.mxu0 0.0
    %232 = vmatpush2.msra.mxu0 0.0
    %233 = vmatprep.subr.mxu0 0.0
    %234 = vmatpush2.msra.mxu0 0.0
    %235 = vmatprep.subr.mxu0 0.0
    %236 = vmatpush2.msra.mxu0 0.0
    %237 = vmatprep.subr.mxu0 0.0
    %238 = vmatpush2.msra.mxu0 0.0
    %239 = vmatprep.subr.mxu0 0.0
    %240 = vmatpush2.msra.mxu0 0.0
    %241 = vmatprep.subr.mxu0 0.0
    %242 = vmatpush2.msra.mxu0 0.0
    %243 = vmatprep.subr.mxu0 0.0
    %244 = vmatpush2.msra.mxu0 0.0
    %245 = vmatprep.subr.mxu0 0.0
    %246 = vmatpush2.msra.mxu0 0.0
    %247 = vmatprep.subr.mxu0 0.0
    %248 = vmatpush2.msra.mxu0 0.0
    %249 = vmatprep.subr.mxu0 0.0
    %250 = vmatpush2.msra.mxu0 0.0
    %251 = vmatprep.subr.mxu0 0.0
    %252 = vmatpush2.msra.mxu0 0.0
    %253 = vmatprep.subr.mxu0 0.0
    %254 = vmatpush2.msra.mxu0 0.0
    %255 = vmatprep.mubr.f32.mxu0 0.0
    %256 = vmatmul.mubr.f32.gmra.mxu0 %v189
    %v257 = vpop.f32.mrf.mxu0
    %v258 = vadd.f32 %v185, %v257
    %v259 = vpop.f32.mrf.mxu0
    %260 = vdwg.mxu0
    %vm261 = vcmp.gt.f32.partialorder %v258, 0.0
    %v262 = vmul.f32 %v258, 0.01
    %v263 = vsel %vm261, %v258, %v262
    %v264 = vld [vmem:[#allocation7] sm:$0xff]
    %v265 = vld [vmem:[#allocation7 + $0x8] sm:$0xff]
    %v266 = vld [vmem:[#allocation7 + $0x10] sm:$0xff]
    %v267 = vld [vmem:[#allocation7 + $0x18] sm:$0xff]
    %v268 = vld [vmem:[#allocation9] sm:$0x1]
    %v270 = vlaneseq
    %v271 = vshrl.u32 %v270, 7
    %v272 = vsub.s32 0, %v271
    %v273 = vrot.slane %v268, %v272
    %v276 = vsel %vm187, %v263, 0
    %278 = vmatprep.subr.mxu0 0.0
    %279 = vmatpush1.msra.mxu0 0.0
    %280 = vmatprep.subr.mxu0 0.0
    %281 = vmatpush1.msra.mxu0 0.0
    %282 = vmatprep.subr.mxu0 0.0
    %283 = vmatpush1.msra.mxu0 0.0
    %284 = vmatprep.subr.mxu0 0.0
    %285 = vmatpush1.msra.mxu0 0.0
    %286 = vmatprep.subr.mxu0 0.0
    %287 = vmatpush1.msra.mxu0 0.0
    %288 = vmatprep.subr.mxu0 0.0
    %289 = vmatpush1.msra.mxu0 0.0
    %290 = vmatprep.subr.mxu0 0.0
    %291 = vmatpush1.msra.mxu0 0.0
    %292 = vmatprep.subr.mxu0 0.0
    %293 = vmatpush1.msra.mxu0 0.0
    %294 = vmatprep.subr.mxu0 0.0
    %295 = vmatpush1.msra.mxu0 0.0
    %296 = vmatprep.subr.mxu0 0.0
    %297 = vmatpush1.msra.mxu0 0.0
    %298 = vmatprep.subr.mxu0 0.0
    %299 = vmatpush1.msra.mxu0 0.0
    %300 = vmatprep.subr.mxu0 0.0
    %301 = vmatpush1.msra.mxu0 0.0
    %302 = vmatprep.subr.mxu0 0.0
    %303 = vmatpush1.msra.mxu0 %v267
    %304 = vmatprep.subr.mxu0 0.0
    %305 = vmatpush1.msra.mxu0 %v266
    %306 = vmatprep.subr.mxu0 0.0
    %307 = vmatpush1.msra.mxu0 %v265
    %308 = vmatprep.subr.mxu0 0.0
    %309 = vmatpush1.msra.mxu0 %v264
    %310 = vmatprep.subr.mxu0 0.0
    %311 = vmatpush2.msra.mxu0 0.0
    %312 = vmatprep.subr.mxu0 0.0
    %313 = vmatpush2.msra.mxu0 0.0
    %314 = vmatprep.subr.mxu0 0.0
    %315 = vmatpush2.msra.mxu0 0.0
    %316 = vmatprep.subr.mxu0 0.0
    %317 = vmatpush2.msra.mxu0 0.0
    %318 = vmatprep.subr.mxu0 0.0
    %319 = vmatpush2.msra.mxu0 0.0
    %320 = vmatprep.subr.mxu0 0.0
    %321 = vmatpush2.msra.mxu0 0.0
    %322 = vmatprep.subr.mxu0 0.0
    %323 = vmatpush2.msra.mxu0 0.0
    %324 = vmatprep.subr.mxu0 0.0
    %325 = vmatpush2.msra.mxu0 0.0
    %326 = vmatprep.subr.mxu0 0.0
    %327 = vmatpush2.msra.mxu0 0.0
    %328 = vmatprep.subr.mxu0 0.0
    %329 = vmatpush2.msra.mxu0 0.0
    %330 = vmatprep.subr.mxu0 0.0
    %331 = vmatpush2.msra.mxu0 0.0
    %332 = vmatprep.subr.mxu0 0.0
    %333 = vmatpush2.msra.mxu0 0.0
    %334 = vmatprep.subr.mxu0 0.0
    %335 = vmatpush2.msra.mxu0 0.0
    %336 = vmatprep.subr.mxu0 0.0
    %337 = vmatpush2.msra.mxu0 0.0
    %338 = vmatprep.subr.mxu0 0.0
    %339 = vmatpush2.msra.mxu0 0.0
    %340 = vmatprep.subr.mxu0 0.0
    %341 = vmatpush2.msra.mxu0 0.0
    %342 = vmatprep.mubr.f32.mxu0 0.0
    %343 = vmatmul.mubr.f32.gmra.mxu0 %v276
    %v344 = vpop.f32.mrf.mxu0
    %v345 = vadd.f32 %v273, %v344
    %v346 = vpop.f32.mrf.mxu0
    %347 = vdwg.mxu0
    %v348 = vlaneseq
    %v349 = vand.u32 %v348, 127
    %vm350 = vcmp.lt.s32.totalorder %v349, 4
    %v351 = vmul.f32 %v345, 1.442695
    %v352 = vpow.pop %v351
    %v353 = vadd.f32 %v352, 1e-06
    %v354 = vrsqrt.pop %v353
    %v355 = vmul.f32 %v353, %v354
    %vm356 = vcmp.eq.f32.partialorder %v353, inf
    %v357 = vsel %vm356, %v353, %v355
    %vm358 = vcmp.eq.f32.partialorder %v353, 0.0
    %v359 = vand.u32 %v353, 2147483648
    %v360 = vsel %vm358, %v359, %v357
    %v361 = vsel %vm350, %v345, %v360
    %362 = vst [vmem:[%s7] sm:$0xff] %v361
    // Predicated region
    $region50: #{encoder_forward.1} parent=1 // pred_check
      _
    $region51: #{encoder_forward.1} parent=1 // pred_check_branch
      %364 = sbr.rel (0) target = $region53
    $region52: #{encoder_forward.1} parent=1 // pred_region
      _
    $region53: #{encoder_forward.1} parent=1 // pred_fallthru
      _
    // Predicated region
    $region54: #{encoder_forward.1} parent=1 // pred_check
      _
    $region55: #{encoder_forward.1} parent=1 // pred_check_branch
      %366 = sbr.rel (0) target = $region57
    $region56: #{encoder_forward.1} parent=1 // pred_region
      _
    $region57: #{encoder_forward.1} parent=1 // pred_fallthru
      _
    %367 = vsyncpa [#allocation3], 1
    %368 = vsyncpa [#allocation5], 1
    %369 = vsyncpa [#allocation8], 1

</llo_original>
